<compile_context>
chip_gen: v7x
topology: tpu7x:2x2x1
jax: 0.10.0
libtpu: 0.0.40
codegen_flags: <defaults>
</compile_context>

<pallas_src>
import math

import jax
import jax.numpy as jnp
from jax.experimental import pallas as pl
from jax.experimental.pallas import tpu as pltpu


def _round_up(x, m):
    return -(-x // m) * m


def _round_down(x, m):
    return (x // m) * m


def _pick_tile_rows(n_rows, t_cap, row_align):
    """Largest aligned tile giving >=2 grid steps when possible, preferring divisors."""
    if n_rows <= row_align:
        return n_rows                                    # single full block
    t_cap = max(row_align, _round_down(int(t_cap), row_align))
    # Cap at ~half the rows so there are always >= 2 grid steps (feeds both
    # TensorCores on v7x and restores compute/writeback overlap).
    two_step = _round_up(pl.cdiv(n_rows, 2), row_align)
    if two_step >= n_rows:
        two_step = max(row_align, _round_down(n_rows - 1, row_align))
    t_hi = max(row_align, min(t_cap, two_step))
    # Prefer a tile that divides n_rows (no ragged tail), but never shrink >2x.
    for t in range(t_hi, max(row_align, t_hi // 2) - 1, -row_align):
        if n_rows % t == 0:
            return t
    return t_hi


def _make_kernel(*, num_embeddings, seq_len, embedding_dim, padding_idx,
                 fold, tile_rows, interpolate, pad_tiles):
    E = embedding_dim
    scale = num_embeddings / seq_len          # align_corners=False row scale
    n_last = float(num_embeddings - 1)
    odd = (E % 2 == 1)

    def kernel(cols_ref, o_ref):
        pid = pl.program_id(0)
        cols = cols_ref[...]                   # (8, lane_width), column constants
        freq = cols[0:1, :]
        phase = cols[1:2, :]

        # row-only quantities
        base = pid * tile_rows
        p = (jax.lax.broadcasted_iota(jnp.int32, (tile_rows, 1), 0) + base
             ).astype(jnp.float32)
        if fold > 1:
            rows = p * float(fold) + cols[4:5, :]        # (T, lw) original row index
        else:
            rows = p                                     # (T, 1)

        if interpolate:
            # PyTorch area_pixel_compute_source_index, align_corners=False
            src = jnp.maximum((rows + 0.5) * scale - 0.5, 0.0)
            i0 = jnp.floor(src)
            lam = src - i0
            not_last = i0 < n_last                       # step = i1 - i0 (0/1)
            # cos(x) = sin(x + pi/2): one angle covers sin & cos columns.
            ang = i0 * freq + phase
            s0 = jnp.sin(ang)
            c0 = jnp.cos(ang)
            # value at i1 = i0 + step via angle addition sin(ang + step*freq)
            s1 = jnp.where(not_last, s0 * cols[2:3, :] + c0 * cols[3:4, :], s0)
            out = s0 + lam * (s1 - s0)                   # (1-lam)*s0 + lam*s1
        else:
            s0 = jnp.sin(rows * freq + phase)
            out = s0

        if odd:                                          # zero-pad column for odd E
            out = out * cols[5:6, :]
        o_ref[...] = out.astype(o_ref.dtype)

        # padding_idx masking only on grid steps whose rows can reach it
        if pad_tiles is not None:
            t_lo, t_hi = pad_tiles
            pad = float(padding_idx)

            @pl.when((pid >= t_lo) & (pid <= t_hi))
            def _():
                if interpolate:
                    i1 = jnp.where(not_last, i0 + 1.0, i0)
                    w0 = jnp.where(i0 == pad, 0.0, 1.0 - lam)
                    w1 = jnp.where(i1 == pad, 0.0, lam)
                    out_p = w0 * s0 + w1 * s1
                else:
                    out_p = jnp.where(rows == pad, 0.0, s0)
                if odd:
                    out_p = out_p * cols[5:6, :]
                o_ref[...] = out_p.astype(o_ref.dtype)

    return kernel


def sinusoidal_positional_embedding(seq_len: int,
                                    num_embeddings: int,
                                    embedding_dim: int,
                                    padding_idx=None,
                                    sequence_first: bool = False,
                                    interpolation_mode: str = "bilinear",
                                    out_dtype=jnp.float32,
                                    max_rows_per_tile: int = 1024):
    """Pallas equivalent of SinusoidalPositionalEmbedding.forward(seq_len)."""
    if interpolation_mode != "bilinear":
        # TODO(synk): only the default 'bilinear' interpolation mode is implemented.
        raise NotImplementedError("only interpolation_mode='bilinear' is supported")
    E = int(embedding_dim)
    half = E // 2
    if half < 2:
        # log(10000)/(half-1) would divide by zero (same issue as the torch code).
        raise ValueError("embedding_dim must be >= 4")
    seq_len = int(seq_len)
    num_embeddings = int(num_embeddings)
    interpolate = seq_len != num_embeddings

    # --- lane-dense folding: pack `fold` rows into one 128-lane-aligned row ---
    fold = 1 if E % 128 == 0 else math.lcm(E, 128) // E
    lane_width = fold * E                     # always a multiple of 128
    n_rows = pl.cdiv(seq_len, fold)           # slab rows (phantom tail sliced off)

    # --- row tiling: 8 MiB block cap, ~20 MiB working-set budget (v7x-safe) ---
    itemsize = jnp.dtype(out_dtype).itemsize
    row_align = 8 if itemsize >= 4 else 16    # bf16 sublane packing -> 16
    bytes_per_row_out = lane_width * itemsize
    bytes_per_row_f32 = lane_width * 4
    live_f32 = 10 if interpolate else 4       # rough count of full-tile f32 temps
    block_cap = 8 * 1024 * 1024
    vmem_budget = 20 * 1024 * 1024
    t_cap = min(int(max_rows_per_tile),
                max(row_align, block_cap // bytes_per_row_out),
                max(row_align, vmem_budget //
                    (2 * bytes_per_row_out + live_f32 * bytes_per_row_f32)))
    tile_rows = _pick_tile_rows(n_rows, t_cap, row_align)
    grid = (pl.cdiv(n_rows, tile_rows),)

    # --- which grid steps can touch padding_idx (superset is safe) -------------
    pad_tiles = None
    if padding_idx is not None:
        pad = int(padding_idx)
        if interpolate:
            scale = num_embeddings / seq_len
            lo = math.floor((pad - 0.5) / scale - 0.5) - 1
            hi = math.ceil((pad + 1.5) / scale - 0.5) + 1
            if pad <= 0:
                lo = 0
            lo = max(lo, 0)
            hi = min(hi, seq_len - 1)
        else:
            lo = hi = pad
        if lo <= hi:
            pad_tiles = ((lo // fold) // tile_rows, (hi // fold) // tile_rows)

    # --- column-only constants, computed once (the grid is a serial loop) ------
    log_ts = math.log(10000.0) / (half - 1)
    q = jnp.arange(lane_width, dtype=jnp.int32)
    c = q % E                                           # original channel index
    j = (c % half).astype(jnp.float32)                  # frequency index
    freq = jnp.exp(j * (-log_ts))
    phase = jnp.where(c < half, jnp.float32(0.0), jnp.float32(math.pi / 2.0))
    cols = jnp.stack([freq, phase, jnp.cos(freq), jnp.sin(freq),
                      (q // E).astype(jnp.float32),         # fold sub-row index
                      (c < 2 * half).astype(jnp.float32),   # odd-E column mask
                      jnp.zeros_like(freq), jnp.zeros_like(freq)], axis=0)

    kernel = _make_kernel(num_embeddings=num_embeddings, seq_len=seq_len,
                          embedding_dim=E, padding_idx=padding_idx, fold=fold,
                          tile_rows=tile_rows, interpolate=interpolate,
                          pad_tiles=pad_tiles)

    total = n_rows * lane_width
    cost = pl.CostEstimate(
        flops=(24 if interpolate else 8) * total,
        transcendentals=(2 if interpolate else 1) * total,
        bytes_accessed=total * itemsize + 8 * lane_width * 4)

    out = pl.pallas_call(
        kernel,
        out_shape=jax.ShapeDtypeStruct((n_rows, lane_width), out_dtype),
        grid=grid,
        in_specs=[pl.BlockSpec((8, lane_width), lambda i: (0, 0))],
        out_specs=pl.BlockSpec((tile_rows, lane_width), lambda i: (i, 0)),
        compiler_params=pltpu.CompilerParams(
            dimension_semantics=("parallel",),
            vmem_limit_bytes=48 * 1024 * 1024),
        cost_estimate=cost,
    )(cols)

    flat = out.reshape(n_rows * fold, E)[:seq_len]      # undo lane fold (layout only)
    if sequence_first:
        return flat.reshape(seq_len, 1, E)
    return flat.reshape(1, seq_len, E)


# ----------------------------------------------------------------------------
# Pure-JAX reference (same math as the PyTorch module) for a sanity check.
# ----------------------------------------------------------------------------
def _reference(seq_len, num_embeddings, embedding_dim, padding_idx=None):
    half = embedding_dim // 2
    emb = math.log(10000.0) / (half - 1)
    freq = jnp.exp(jnp.arange(half, dtype=jnp.float32) * -emb)
    pos = jnp.arange(num_embeddings, dtype=jnp.float32)[:, None] * freq[None, :]
    table = jnp.concatenate([jnp.sin(pos), jnp.cos(pos)], axis=1)
    if embedding_dim % 2 == 1:
        table = jnp.concatenate(
            [table, jnp.zeros((num_embeddings, 1), jnp.float32)], axis=1)
    if padding_idx is not None:
        table = table.at[padding_idx, :].set(0.0)
    if seq_len == num_embeddings:
        return table[None]
    # bilinear interpolation along rows, align_corners=False (width unchanged)
    scale = num_embeddings / seq_len
    src = jnp.maximum((jnp.arange(seq_len, dtype=jnp.float32) + 0.5) * scale - 0.5, 0.0)
    i0 = jnp.floor(src)
    lam = src - i0
    i1 = jnp.where(i0 < num_embeddings - 1, i0 + 1.0, i0)
    r0 = table[i0.astype(jnp.int32)]
    r1 = table[i1.astype(jnp.int32)]
    out = (1.0 - lam)[:, None] * r0 + lam[:, None] * r1
    return out[None]


if __name__ == "__main__":
    key = jax.random.PRNGKey(0)   # module has no learned params; kept for convention
    del key

    # Case 1: interpolation path, lane-folded output (E=32 -> fold=4 -> 128 lanes).
    ne, E, pad, sl = 16, 32, 0, 8
    out_a = sinusoidal_positional_embedding(sl, ne, E, padding_idx=pad)
    jax.block_until_ready(out_a)
    ref_a = _reference(sl, ne, E, pad)
    assert out_a.shape == (1, sl, E)
    assert float(jnp.max(jnp.abs(out_a - ref_a))) < 1e-4

    # Case 2: identity path (seq_len == num_embeddings), sequence_first=True.
    out_b = sinusoidal_positional_embedding(ne, ne, E, padding_idx=pad,
                                            sequence_first=True)
    jax.block_until_ready(out_b)
    ref_b = _reference(ne, ne, E, pad)
    assert out_b.shape == (ne, 1, E)
    assert float(jnp.max(jnp.abs(out_b.reshape(1, ne, E) - ref_b))) < 1e-4

    # Case 3: unfolded path (E multiple of 128), multi-step row grid with a
    # ragged last tile (20 rows, 8-row tiles -> grid of 3).
    ne3, E3, sl3 = 32, 128, 20
    out_c = sinusoidal_positional_embedding(sl3, ne3, E3, padding_idx=None,
                                            max_rows_per_tile=8)
    jax.block_until_ready(out_c)
    ref_c = _reference(sl3, ne3, E3, None)
    assert out_c.shape == (1, sl3, E3)
    assert float(jnp.max(jnp.abs(out_c - ref_c))) < 1e-4

    # Case 4: odd embedding dim + fold padding (seq_len % fold != 0) + padding_idx.
    ne4, E4, sl4, pad4 = 16, 33, 10, 1
    out_d = sinusoidal_positional_embedding(sl4, ne4, E4, padding_idx=pad4)
    jax.block_until_ready(out_d)
    ref_d = _reference(sl4, ne4, E4, pad4)
    assert out_d.shape == (1, sl4, E4)
    assert float(jnp.max(jnp.abs(out_d - ref_d))) < 1e-4

    print("KERNEL_OK")
</pallas_src>

<mosaic_0001>
module attributes {stable_mosaic.version = 11 : i64} {
  func.func @kernel(%arg0: i32, %arg1: memref<8x128xf32, #tpu.memory_space<vmem>>, %arg2: memref<2x128xf32, #tpu.memory_space<vmem>>) attributes {dimension_semantics = [#tpu.dimension_semantics<parallel>], iteration_bounds = array<i64: 1>, scalar_prefetch = 0 : i64, scratch_operands = 0 : i64, tpu.core_type = #tpu.core_type<tc>, window_params = [{pipeline_mode = #tpu.pipeline_mode<synchronous>, transform_indices = @transform_0, window_bounds = array<i64: 8, 128>}, {transform_indices = @transform_1, window_bounds = array<i64: 2, 128>}]} {
    %c0 = arith.constant 0 : index
    %c0_0 = arith.constant 0 : index
    %0 = vector.load %arg1[%c0, %c0_0] : memref<8x128xf32, #tpu.memory_space<vmem>>, vector<8x128xf32>
    %1 = vector.extract_strided_slice %0 {offsets = [0, 0], sizes = [1, 128], strides = [1, 1]} : vector<8x128xf32> to vector<1x128xf32>
    %2 = vector.extract_strided_slice %0 {offsets = [1, 0], sizes = [1, 128], strides = [1, 1]} : vector<8x128xf32> to vector<1x128xf32>
    %c2_i32 = arith.constant 2 : i32
    %3 = arith.muli %arg0, %c2_i32 : i32
    %4 = tpu.iota {dimensions = array<i32: 0>} : vector<2x1xi32>
    %5 = vector.broadcast %3 : i32 to vector<2x1xi32>
    %6 = arith.addi %4, %5 : vector<2x1xi32>
    %7 = arith.sitofp %6 : vector<2x1xi32> to vector<2x1xf32>
    %cst = arith.constant 4.000000e+00 : f32
    %8 = vector.broadcast %cst : f32 to vector<2x1xf32>
    %9 = arith.mulf %7, %8 : vector<2x1xf32>
    %10 = vector.extract_strided_slice %0 {offsets = [4, 0], sizes = [1, 128], strides = [1, 1]} : vector<8x128xf32> to vector<1x128xf32>
    %11 = vector.broadcast %9 : vector<2x1xf32> to vector<2x128xf32>
    %12 = vector.broadcast %10 : vector<1x128xf32> to vector<2x128xf32>
    %13 = arith.addf %11, %12 : vector<2x128xf32>
    %cst_1 = arith.constant 5.000000e-01 : f32
    %14 = vector.broadcast %cst_1 : f32 to vector<2x128xf32>
    %15 = arith.addf %13, %14 : vector<2x128xf32>
    %cst_2 = arith.constant 2.000000e+00 : f32
    %16 = vector.broadcast %cst_2 : f32 to vector<2x128xf32>
    %17 = arith.mulf %15, %16 : vector<2x128xf32>
    %cst_3 = arith.constant 5.000000e-01 : f32
    %18 = vector.broadcast %cst_3 : f32 to vector<2x128xf32>
    %19 = arith.subf %17, %18 : vector<2x128xf32>
    %cst_4 = arith.constant 0.000000e+00 : f32
    %20 = vector.broadcast %cst_4 : f32 to vector<2x128xf32>
    %21 = arith.maximumf %19, %20 : vector<2x128xf32>
    %22 = math.floor %21 : vector<2x128xf32>
    %23 = arith.subf %21, %22 : vector<2x128xf32>
    %cst_5 = arith.constant 1.500000e+01 : f32
    %24 = vector.broadcast %cst_5 : f32 to vector<2x128xf32>
    %25 = arith.cmpf olt, %22, %24 : vector<2x128xf32>
    %26 = vector.broadcast %1 : vector<1x128xf32> to vector<2x128xf32>
    %27 = arith.mulf %22, %26 : vector<2x128xf32>
    %28 = vector.broadcast %2 : vector<1x128xf32> to vector<2x128xf32>
    %29 = arith.addf %27, %28 : vector<2x128xf32>
    %30 = math.sin %29 : vector<2x128xf32>
    %31 = math.cos %29 : vector<2x128xf32>
    %32 = vector.extract_strided_slice %0 {offsets = [2, 0], sizes = [1, 128], strides = [1, 1]} : vector<8x128xf32> to vector<1x128xf32>
    %33 = vector.broadcast %32 : vector<1x128xf32> to vector<2x128xf32>
    %34 = arith.mulf %30, %33 : vector<2x128xf32>
    %35 = vector.extract_strided_slice %0 {offsets = [3, 0], sizes = [1, 128], strides = [1, 1]} : vector<8x128xf32> to vector<1x128xf32>
    %36 = vector.broadcast %35 : vector<1x128xf32> to vector<2x128xf32>
    %37 = arith.mulf %31, %36 : vector<2x128xf32>
    %38 = arith.addf %34, %37 : vector<2x128xf32>
    %39 = arith.select %25, %38, %30 : vector<2x128xi1>, vector<2x128xf32>
    %40 = arith.subf %39, %30 : vector<2x128xf32>
    %41 = arith.mulf %23, %40 : vector<2x128xf32>
    %42 = arith.addf %30, %41 : vector<2x128xf32>
    %c0_6 = arith.constant 0 : index
    %c0_7 = arith.constant 0 : index
    %43 = vector.load %arg2[%c0_6, %c0_7] : memref<2x128xf32, #tpu.memory_space<vmem>>, vector<2x128xf32>
    tpu.vector_store %arg2[%c0_6, %c0_7], %42 {strides = array<i32>} : memref<2x128xf32, #tpu.memory_space<vmem>>, vector<2x128xf32>,
    %c0_i32 = arith.constant 0 : i32
    %44 = arith.cmpi sge, %arg0, %c0_i32 : i32
    %c0_i32_8 = arith.constant 0 : i32
    %45 = arith.cmpi sle, %arg0, %c0_i32_8 : i32
    %46 = arith.andi %44, %45 : i1
    %47 = arith.extui %46 : i1 to i32
    %c0_i32_9 = arith.constant 0 : i32
    %48 = arith.cmpi ne, %47, %c0_i32_9 : i32
    scf.if %48 {
      %cst_10 = arith.constant 1.000000e+00 : f32
      %49 = vector.broadcast %cst_10 : f32 to vector<2x128xf32>
      %50 = arith.addf %22, %49 : vector<2x128xf32>
      %51 = arith.select %25, %50, %22 : vector<2x128xi1>, vector<2x128xf32>
      %cst_11 = arith.constant 0.000000e+00 : f32
      %52 = vector.broadcast %cst_11 : f32 to vector<2x128xf32>
      %53 = arith.cmpf oeq, %22, %52 : vector<2x128xf32>
      %cst_12 = arith.constant 1.000000e+00 : f32
      %54 = vector.broadcast %cst_12 : f32 to vector<2x128xf32>
      %55 = arith.subf %54, %23 : vector<2x128xf32>
      %cst_13 = arith.constant 0.000000e+00 : f32
      %56 = vector.broadcast %cst_13 : f32 to vector<2x128xf32>
      %57 = arith.select %53, %56, %55 : vector<2x128xi1>, vector<2x128xf32>
      %cst_14 = arith.constant 0.000000e+00 : f32
      %58 = vector.broadcast %cst_14 : f32 to vector<2x128xf32>
      %59 = arith.cmpf oeq, %51, %58 : vector<2x128xf32>
      %cst_15 = arith.constant 0.000000e+00 : f32
      %60 = vector.broadcast %cst_15 : f32 to vector<2x128xf32>
      %61 = arith.select %59, %60, %23 : vector<2x128xi1>, vector<2x128xf32>
      %62 = arith.mulf %57, %30 : vector<2x128xf32>
      %63 = arith.mulf %61, %39 : vector<2x128xf32>
      %64 = arith.addf %62, %63 : vector<2x128xf32>
      %c0_16 = arith.constant 0 : index
      %c0_17 = arith.constant 0 : index
      %65 = vector.load %arg2[%c0_16, %c0_17] : memref<2x128xf32, #tpu.memory_space<vmem>>, vector<2x128xf32>
      tpu.vector_store %arg2[%c0_16, %c0_17], %64 {strides = array<i32>} : memref<2x128xf32, #tpu.memory_space<vmem>>, vector<2x128xf32>,
    } else {
    }
    return
  }
  func.func @transform_0(%arg0: i32) -> (i32, i32) {
    %c0_i32 = arith.constant 0 : i32
    %c0_i32_0 = arith.constant 0 : i32
    %c0_i32_1 = arith.constant 0 : i32
    return %c0_i32, %c0_i32_0 : i32, i32
  }
  func.func @transform_1(%arg0: i32) -> (i32, i32) {
    %c0_i32 = arith.constant 0 : i32
    %c0_i32_0 = arith.constant 0 : i32
    return %arg0, %c0_i32 : i32, i32
  }
}

</mosaic_0001>

<llo_original>
// kernel: tpu_custom_call.1
$region0: #{tpu_custom_call.1}
  #allocation0 [shape = 'u32[]', space=smem, size = 0x4, offset = 0x4, fixed_abs, tag = 'smem constant byte address 0x4 - core index']
  #allocation1 [shape = 'u32[144,128]{1,0:T(1,128)}', space=vmem, size = 0x12000, scoped, tag = 'internal scratch']
  %s0 = inlined_call_operand.hbm [shape: f32[8,128], index: 0, kind: input, shape index: {}]
  %s1 = inlined_call_operand.hbm [shape: f32[2,128], index: 1, kind: output, shape index: {}]
  %s2 = sld [smem:[#allocation0]]
  $region22: #{tpu_custom_call.1} parent=0
    _
  %s4 = ssub.s32 1, %s2
  %s5 = scalar_select 0, %s4, %s2
  $region1: #{tpu_custom_call.1} parent=0
    #allocation2 [shape = 'u8[4096]{0}', space=vmem, size = 0x1000, scoped, tag = 'input window, operand 0, single buffered']
    #allocation3 [shape = 's32[1]{0}', space=sflag, size = 0x4, scoped, tag = 'scoped memory for tpu_custom_call.1']
    #allocation4 [shape = 's32[1]{0}', space=sflag, size = 0x4, scoped, tag = 'scoped memory for tpu_custom_call.1']
    #allocation5 [shape = 'u8[1024]{0}', space=vmem, size = 0x400, scoped, tag = 'output window, operand 0, single buffered']
    %6 = vsyncpa [#allocation3], 0
    %7 = vsyncpa [#allocation4], 0
    // Predicated region
    $region2: #{tpu_custom_call.1} parent=1 // pred_check
      _
    $region3: #{tpu_custom_call.1} parent=1 // pred_check_branch
      %9 = sbr.rel (0) target = $region5
    $region4: #{tpu_custom_call.1} parent=1 // pred_region
      %s11 = ssub.s32 128, 128
      %12 = vsyncadd [#allocation3], %s11
      %s14 = sshll.u32 [#allocation2], 4
      %s15 = int_to_ptr.vmem [resolvable:$true] %s14
      %17 = dma.hbm_to_vmem [thread:$0]  %s0, 128, %s15, [#allocation3]
    $region5: #{tpu_custom_call.1} parent=1 // pred_fallthru
      _
    // Predicated region
    $region6: #{tpu_custom_call.1} parent=1 // pred_check
      _
    $region7: #{tpu_custom_call.1} parent=1 // pred_check_branch
      %19 = sbr.rel (0) target = $region9
    $region8: #{tpu_custom_call.1} parent=1 // pred_region
      %20 = dma.done [#allocation3], 128
    $region9: #{tpu_custom_call.1} parent=1 // pred_fallthru
      _
    %v21 = vld [vmem:[#allocation2] sm:$0xff]
    %s22 = smul.u32 0, 2
    %v23 = vlaneseq
    %v24 = vshrl.u32 %v23, 7
    %v25 = vstv %s22
    %v26 = vadd.s32 %v24, %v25
    %v27 = vcvt.s32.f32 %v26
    %v28 = vmul.f32 %v27, 4.0
    %v29 = vlaneseq
    %v30 = vshrl.u32 %v29, 7
    %v31 = vsub.s32 4, %v30
    %v32 = vrot.slane %v21, %v31
    %v33 = vadd.f32 %v28, %v32
    %v34 = vadd.f32 %v33, 0.5
    %v35 = vmul.f32 %v34, 2.0
    %v36 = vsub.f32 %v35, 0.5
    %v37 = vmax.f32 %v36, 0.0
    %v38 = vfloor.f32 %v37
    %v39 = vsub.f32 %v37, %v38
    %vm40 = vcmp.lt.f32.partialorder %v38, 15.0
    %v41 = vlaneseq
    %v42 = vshrl.u32 %v41, 7
    %v43 = vsub.s32 0, %v42
    %v44 = vrot.slane %v21, %v43
    %v45 = vmul.f32 %v38, %v44
    %v46 = vlaneseq
    %v47 = vshrl.u32 %v46, 7
    %v48 = vsub.s32 1, %v47
    %v49 = vrot.slane %v21, %v48
    %v50 = vadd.f32 %v45, %v49
    %v51 = vand.u32 2147483647, %v50
    %vm52 = vcmp.le.f32.partialorder %v51, 0.7853982
    %vm53 = vcmp.lt.s32.totalorder %v50, 0
    %v54 = vand.u32 %v50, 2139095040
    %v55 = vshrl.u32 %v54, 23
    %v56 = vsub.s32 %v55, 127
    %v57 = vand.u32 2147483647, %v50
    %v58 = vand.u32 %v57, 8388607
    %v59 = vor.u32 %v58, 8388608
    %v60 = vsub.s32 0, %v59
    %v61 = vadd.s32 %v56, 1
    %vm62 = vcmp.gt.s32.totalorder %v61, 0
    %v63 = vsel %vm62, %v61, 0
    %v64 = vshrl.u32 %v63, 5
    %v65 = vand.u32 %v63, 31
    %v66 = vsub.s32 32, %v65
    %v67 = vshrl.u32 683565275, %v66
    %v68 = vshll.u32 683565275, %v65
    %v69 = vshrl.u32 2475754826, %v66
    %v70 = vor.u32 %v68, %v69
    %v71 = vshll.u32 2475754826, %v65
    %v72 = vshrl.u32 2131351028, %v66
    %v73 = vor.u32 %v71, %v72
    %v74 = vshll.u32 2131351028, %v65
    %v75 = vshrl.u32 2102212464, %v66
    %v76 = vor.u32 %v74, %v75
    %v77 = vshll.u32 2102212464, %v65
    %v78 = vshrl.u32 920167782, %v66
    %v79 = vor.u32 %v77, %v78
    %v80 = vshll.u32 920167782, %v65
    %v81 = vshrl.u32 1326507024, %v66
    %v82 = vor.u32 %v80, %v81
    %vm83 = vcmp.lt.s32.totalorder %v64, 1
    %vm84 = vcmp.lt.s32.totalorder %v64, 2
    %vm85 = vcmp.lt.s32.totalorder %v64, 3
    %vm86 = vcmp.lt.s32.totalorder %v64, 4
    %v87 = vsel %vm83, %v67, %v70
    %v88 = vsel %vm86, %v76, 2102212464
    %v89 = vsel %vm85, %v73, %v88
    %v90 = vsel %vm84, %v87, %v89
    %v91 = vsel %vm83, %v70, %v73
    %v92 = vsel %vm86, %v79, 920167782
    %v93 = vsel %vm85, %v76, %v92
    %v94 = vsel %vm84, %v91, %v93
    %v95 = vsel %vm83, %v73, %v76
    %v96 = vsel %vm86, %v82, 1326507024
    %v97 = vsel %vm85, %v79, %v96
    %v98 = vsel %vm84, %v95, %v97
    %v99 = vshll.u32 %v59, 8
    %v100 = vmul.u32.u64.compose %v99, %v98
    %v101 = vextract.low.u32 %v100
    %v102 = vextract.high.u32 %v100
    %v103 = vmul.u32.u64.compose %v99, %v94
    %v104 = vextract.low.u32 %v103
    %v105 = vextract.high.u32 %v103
    %v106 = vmul.u32 %v99, %v90
    %v107 = vadd.s32 %v102, %v104
    %vm108 = vc.u32 %v102, %v104
    %v109 = vadd.s32 %v105, 1
    %v110 = vsel %vm108, %v109, %v105
    %v111 = vadd.s32 %v106, %v110
    %v112 = vadd.s32 %v111, 536870912
    %v113 = vshrl.u32 %v112, 30
    %v114 = vshll.u32 %v113, 30
    %v115 = vsub.s32 %v111, %v114
    %vm116 = vcmp.lt.s32.totalorder %v115, 0
    %v117 = vsub.s32 0, %v115
    %v118 = vsel %vm116, %v117, %v115
    %v119 = vclz %v118
    %v120 = vsub.s32 %v119, 2
    %vm121 = vcmp.gt.s32.totalorder 0, %v120
    %v122 = vsel %vm121, 0, %v120
    %v123 = vsub.s32 32, %v122
    %v124 = vshll.u32 %v115, %v122
    %v125 = vshrl.u32 %v107, %v123
    %v126 = vor.u32 %v124, %v125
    %v127 = vsub.s32 4294967266, %v122
    %v128 = vadd.s32 %v127, 127
    %v129 = vshll.u32 %v128, 23
    %v130 = vor.u32 4788187, %v129
    %v131 = vand.u32 2147483647, %v130
    %v133 = vcvt.s32.f32 %v126
    %v134 = vmul.f32 %v133, %v131
    %v135 = vxor.u32 %v134, 2147483648
    %v136 = vsel %vm53, %v135, %v134
    %v137 = vsub.s32 4, %v113
    %v138 = vsel %vm53, %v137, %v113
    %v139 = vsel %vm52, %v50, %v136
    %v140 = vsel %vm52, 0, %v138
    %v141 = vcosq.f32.pop %v139
    %v142 = vsinq.f32.pop %v139
    %vm143 = vweird.f32 %v50
    %v144 = vadd.s32 %v140, 3
    %v145 = vand.u32 %v144, 3
    %vm146 = vcmp.lt.s32.totalorder %v145, 2
    %vm147 = vcmp.eq.s32.totalorder %v145, 0
    %v148 = vxor.u32 %v142, 2147483648
    %v149 = vsel %vm147, %v141, %v148
    %vm150 = vcmp.eq.s32.totalorder %v145, 2
    %v151 = vxor.u32 %v141, 2147483648
    %v152 = vsel %vm150, %v151, %v142
    %v153 = vsel %vm146, %v149, %v152
    %v154 = vsel %vm143, nan, %v153
    %v155 = vand.u32 2147483647, %v50
    %vm156 = vcmp.le.f32.partialorder %v155, 0.7853982
    %vm157 = vcmp.lt.s32.totalorder %v50, 0
    %v158 = vand.u32 %v50, 2139095040
    %v159 = vshrl.u32 %v158, 23
    %v160 = vsub.s32 %v159, 127
    %v161 = vand.u32 2147483647, %v50
    %v162 = vand.u32 %v161, 8388607
    %v163 = vor.u32 %v162, 8388608
    %v164 = vsub.s32 0, %v163
    %v165 = vadd.s32 %v160, 1
    %vm166 = vcmp.gt.s32.totalorder %v165, 0
    %v167 = vsel %vm166, %v165, 0
    %v168 = vshrl.u32 %v167, 5
    %v169 = vand.u32 %v167, 31
    %v170 = vsub.s32 32, %v169
    %v171 = vshrl.u32 683565275, %v170
    %v172 = vshll.u32 683565275, %v169
    %v173 = vshrl.u32 2475754826, %v170
    %v174 = vor.u32 %v172, %v173
    %v175 = vshll.u32 2475754826, %v169
    %v176 = vshrl.u32 2131351028, %v170
    %v177 = vor.u32 %v175, %v176
    %v178 = vshll.u32 2131351028, %v169
    %v179 = vshrl.u32 2102212464, %v170
    %v180 = vor.u32 %v178, %v179
    %v181 = vshll.u32 2102212464, %v169
    %v182 = vshrl.u32 920167782, %v170
    %v183 = vor.u32 %v181, %v182
    %v184 = vshll.u32 920167782, %v169
    %v185 = vshrl.u32 1326507024, %v170
    %v186 = vor.u32 %v184, %v185
    %vm187 = vcmp.lt.s32.totalorder %v168, 1
    %vm188 = vcmp.lt.s32.totalorder %v168, 2
    %vm189 = vcmp.lt.s32.totalorder %v168, 3
    %vm190 = vcmp.lt.s32.totalorder %v168, 4
    %v191 = vsel %vm187, %v171, %v174
    %v192 = vsel %vm190, %v180, 2102212464
    %v193 = vsel %vm189, %v177, %v192
    %v194 = vsel %vm188, %v191, %v193
    %v195 = vsel %vm187, %v174, %v177
    %v196 = vsel %vm190, %v183, 920167782
    %v197 = vsel %vm189, %v180, %v196
    %v198 = vsel %vm188, %v195, %v197
    %v199 = vsel %vm187, %v177, %v180
    %v200 = vsel %vm190, %v186, 1326507024
    %v201 = vsel %vm189, %v183, %v200
    %v202 = vsel %vm188, %v199, %v201
    %v203 = vshll.u32 %v163, 8
    %v204 = vmul.u32.u64.compose %v203, %v202
    %v205 = vextract.low.u32 %v204
    %v206 = vextract.high.u32 %v204
    %v207 = vmul.u32.u64.compose %v203, %v198
    %v208 = vextract.low.u32 %v207
    %v209 = vextract.high.u32 %v207
    %v210 = vmul.u32 %v203, %v194
    %v211 = vadd.s32 %v206, %v208
    %vm212 = vc.u32 %v206, %v208
    %v213 = vadd.s32 %v209, 1
    %v214 = vsel %vm212, %v213, %v209
    %v215 = vadd.s32 %v210, %v214
    %v216 = vadd.s32 %v215, 536870912
    %v217 = vshrl.u32 %v216, 30
    %v218 = vshll.u32 %v217, 30
    %v219 = vsub.s32 %v215, %v218
    %vm220 = vcmp.lt.s32.totalorder %v219, 0
    %v221 = vsub.s32 0, %v219
    %v222 = vsel %vm220, %v221, %v219
    %v223 = vclz %v222
    %v224 = vsub.s32 %v223, 2
    %vm225 = vcmp.gt.s32.totalorder 0, %v224
    %v226 = vsel %vm225, 0, %v224
    %v227 = vsub.s32 32, %v226
    %v228 = vshll.u32 %v219, %v226
    %v229 = vshrl.u32 %v211, %v227
    %v230 = vor.u32 %v228, %v229
    %v231 = vsub.s32 4294967266, %v226
    %v232 = vadd.s32 %v231, 127
    %v233 = vshll.u32 %v232, 23
    %v234 = vor.u32 4788187, %v233
    %v235 = vand.u32 2147483647, %v234
    %v237 = vcvt.s32.f32 %v230
    %v238 = vmul.f32 %v237, %v235
    %v239 = vxor.u32 %v238, 2147483648
    %v240 = vsel %vm157, %v239, %v238
    %v241 = vsub.s32 4, %v217
    %v242 = vsel %vm157, %v241, %v217
    %v243 = vsel %vm156, %v50, %v240
    %v244 = vsel %vm156, 0, %v242
    %v245 = vcosq.f32.pop %v243
    %v246 = vsinq.f32.pop %v243
    %vm247 = vweird.f32 %v50
    %v248 = vand.u32 %v244, 3
    %vm249 = vcmp.lt.s32.totalorder %v248, 2
    %vm250 = vcmp.eq.s32.totalorder %v248, 0
    %v251 = vxor.u32 %v246, 2147483648
    %v252 = vsel %vm250, %v245, %v251
    %vm253 = vcmp.eq.s32.totalorder %v248, 2
    %v254 = vxor.u32 %v245, 2147483648
    %v255 = vsel %vm253, %v254, %v246
    %v256 = vsel %vm249, %v252, %v255
    %v257 = vsel %vm247, nan, %v256
    %v258 = vlaneseq
    %v259 = vshrl.u32 %v258, 7
    %v260 = vsub.s32 2, %v259
    %v261 = vrot.slane %v21, %v260
    %v262 = vmul.f32 %v154, %v261
    %v263 = vlaneseq
    %v264 = vshrl.u32 %v263, 7
    %v265 = vsub.s32 3, %v264
    %v266 = vrot.slane %v21, %v265
    %v267 = vmul.f32 %v257, %v266
    %v268 = vadd.f32 %v262, %v267
    %v269 = vsel %vm40, %v268, %v154
    %v270 = vsub.f32 %v269, %v154
    %v271 = vmul.f32 %v39, %v270
    %v272 = vadd.f32 %v154, %v271
    %273 = vst [vmem:[#allocation5] sm:$0x3] %v272
    %p274 = scmp.ge.s32.totalorder 0, 0
    %p275 = scmp.le.s32.totalorder 0, 0
    %p276 = pnand %p274, %p275
    %p277 = pneg %p276
    // Predicated region
    $region10: #{tpu_custom_call.1} parent=1 // pred_check
      _
    $region11: #{tpu_custom_call.1} parent=1 // pred_check_branch
      %279 = sbr.rel (%p276) target = $region13
    $region12: #{tpu_custom_call.1} parent=1 // pred_region
      %v280 = vadd.f32 %v38, 1.0
      %v281 = vsel %vm40, %v280, %v38
      %vm282 = vcmp.eq.f32.partialorder %v38, 0.0
      %v283 = vsub.f32 1.0, %v39
      %v284 = vsel %vm282, 0.0, %v283
      %vm285 = vcmp.eq.f32.partialorder %v281, 0.0
      %v286 = vsel %vm285, 0.0, %v39
      %v287 = vmul.f32 %v284, %v154
      %v288 = vmul.f32 %v286, %v269
      %v289 = vadd.f32 %v287, %v288
      %290 = vst [vmem:[#allocation5] sm:$0x3] %v289
    $region13: #{tpu_custom_call.1} parent=1 // pred_fallthru
      _
    // Predicated region
    $region14: #{tpu_custom_call.1} parent=1 // pred_check
      _
    $region15: #{tpu_custom_call.1} parent=1 // pred_check_branch
      %292 = sbr.rel (0) target = $region17
    $region16: #{tpu_custom_call.1} parent=1 // pred_region
      %s294 = ssub.s32 32, 32
      %295 = vsyncadd [#allocation4], %s294
      %s297 = sshll.u32 [#allocation5], 4
      %s298 = int_to_ptr.vmem [resolvable:$true] %s297
      %300 = dma.vmem_to_hbm [thread:$0]  %s298, 32, %s1, [#allocation4]
    $region17: #{tpu_custom_call.1} parent=1 // pred_fallthru
      _
    // Predicated region
    $region18: #{tpu_custom_call.1} parent=1 // pred_check
      _
    $region19: #{tpu_custom_call.1} parent=1 // pred_check_branch
      %302 = sbr.rel (0) target = $region21
    $region20: #{tpu_custom_call.1} parent=1 // pred_region
      %303 = dma.done [#allocation4], 32
    $region21: #{tpu_custom_call.1} parent=1 // pred_fallthru
      _
    %304 = vsyncpa [#allocation3], 1
    %305 = vsyncpa [#allocation4], 1

</llo_original>
